<compile_context>
chip_gen: v6e
topology: v6e:2x2x1
jax: 0.10.0
libtpu: 0.0.40
codegen_flags: <defaults>
</compile_context>

<pallas_src>
import functools

import jax
import jax.numpy as jnp
from jax.experimental import pallas as pl
from jax.experimental.pallas import tpu as pltpu

LATENT_DIM = 4
HIDDEN1 = 128
HIDDEN2 = 128
OUT_PAD = 128          # latent padded to a full lane width for dense stores


# --------------------------------------------------------------------------
# Physics step (shared by kernel and reference)
# --------------------------------------------------------------------------
def _phys_step(z_prev, z_cur, k, c, dt):
    # TODO(synk): Damped_oscillation source unavailable; standard damped
    # oscillator: v from finite difference, a = -k*z - c*v, explicit update.
    v = (z_cur - z_prev) / dt
    a = -k * z_cur - c * v
    return z_cur + v * dt + a * dt * dt


# --------------------------------------------------------------------------
# Fused kernel: encoder MLP (MXU) + physics rollout (VPU) in one pallas_call
# --------------------------------------------------------------------------
def _fused_kernel(x_ref, w1_ref, b1_ref, w2_ref, b2_ref, w3_ref, b3_ref,
                  z_ref, z2_ref, zr_ref, *, b_tile, T, k, c, dt):
    # ---- encoder: channel sum already folded into the stacked W1 ----------
    x = x_ref[...]                                            # (b_tile*T, C*HW)
    h = jnp.dot(x, w1_ref[...], preferred_element_type=jnp.float32) + b1_ref[...]
    h = jnp.maximum(h, 0.0)
    h = jnp.dot(h.astype(w2_ref.dtype), w2_ref[...],
                preferred_element_type=jnp.float32) + b2_ref[...]
    h = jnp.maximum(h, 0.0)
    zp = jnp.dot(h.astype(w3_ref.dtype), w3_ref[...],
                 preferred_element_type=jnp.float32) + b3_ref[...]  # (rows, 128)

    z3 = zp.reshape(b_tile, T, OUT_PAD)     # (batch, time, 128); cols 4: are 0
    z_ref[...] = z3                         # lane-dense store

    # ---- teacher-forced rollout (z_renorm): vectorized over time ----------
    zr_ref[:, 0:2, :] = z3[:, 0:2, :]
    if T > 2:
        zr_ref[:, 2:T, :] = _phys_step(z3[:, 0:T - 2, :], z3[:, 1:T - 1, :],
                                       k, c, dt)

    # ---- autoregressive rollout (z2_phys): fully unrolled (static T) ------
    # Frames live in registers; each store is a 128-lane-wide row of the VMEM
    # output block, and the whole block is written back to HBM in one DMA.
    z2_ref[:, 0:2, :] = z3[:, 0:2, :]
    z_prev = z3[:, 0, :]
    z_cur = z3[:, 1, :]
    for i in range(T - 2):                  # static unroll
        z_next = _phys_step(z_prev, z_cur, k, c, dt)
        z2_ref[:, 2 + i, :] = z_next
        z_prev, z_cur = z_cur, z_next


def _pick_b_tile(B, T, chw, itemsize, budget_bytes=8 * 1024 * 1024):
    """Largest batch tile whose double-buffered input block fits the budget.

    Only the batch axis is tiled (the rollout needs the whole time axis).
    A tile smaller than B must keep the block row count sublane-aligned.
    The 8 MiB budget leaves ample headroom on v7x's 64 MiB VMEM.
    """
    if 2 * B * T * chw * itemsize <= budget_bytes:
        return B
    for bt in range(B - 1, 0, -1):
        if B % bt or (bt * T) % 8:
            continue
        if 2 * bt * T * chw * itemsize <= budget_bytes:
            return bt
    return B            # no legal smaller tile; fall back to a single block


# --------------------------------------------------------------------------
# Forward wrapper (latent_dim == 4 branch of EndPhysMultiple.forward)
# --------------------------------------------------------------------------
def end_phys_multiple_forward(x, params, *, k_spring, c_damp, dt,
                              matmul_dtype=jnp.bfloat16):
    """x: (B, T, C, H, W) -> (z, z2_phys, z_renorm), each (B, T, 4).

    matmul_dtype: dtype of the MXU inputs (bf16 recommended on v6e/v7x; use
    jnp.float32 for bit-faithful math).  Accumulation and all element-wise
    work (bias, ReLU, physics) are f32 in either mode, which keeps v5e happy.
    """
    B, T, C, H, W = x.shape
    assert T >= 2, "physics rollout needs at least two frames"
    chw = C * H * W
    w1, b1, w2, b2, w3, b3 = params

    # Fold the channel sum into the first matmul (stack W1 vertically C times).
    x_flat = x.reshape(B * T, chw).astype(matmul_dtype)
    w1s = jnp.concatenate([w1] * C, axis=0).astype(matmul_dtype)    # (C*HW, H1)
    w2c = w2.astype(matmul_dtype)
    # Zero-pad the last layer to a lane-dense 128-wide output.
    w3p = jnp.zeros((w3.shape[0], OUT_PAD), w3.dtype).at[:, :LATENT_DIM].set(w3)
    w3p = w3p.astype(matmul_dtype)
    b3p = jnp.zeros((1, OUT_PAD), jnp.float32).at[:, :LATENT_DIM].set(
        b3.astype(jnp.float32))
    b1c = b1.astype(jnp.float32)
    b2c = b2.astype(jnp.float32)

    b_tile = _pick_b_tile(B, T, chw, jnp.dtype(matmul_dtype).itemsize)
    grid = (B // b_tile,)
    rows = b_tile * T

    kernel = functools.partial(_fused_kernel, b_tile=b_tile, T=T,
                               k=float(k_spring), c=float(c_damp), dt=float(dt))

    out_sd = jax.ShapeDtypeStruct((B, T, OUT_PAD), jnp.float32)
    out_bs = pl.BlockSpec((b_tile, T, OUT_PAD), lambda i: (i, 0, 0))
    z_pad, z2_pad, zr_pad = pl.pallas_call(
        kernel,
        out_shape=(out_sd, out_sd, out_sd),
        grid=grid,
        in_specs=[
            pl.BlockSpec((rows, chw), lambda i: (i, 0)),
            pl.BlockSpec(w1s.shape, lambda i: (0, 0)),
            pl.BlockSpec(b1c.shape, lambda i: (0, 0)),
            pl.BlockSpec(w2c.shape, lambda i: (0, 0)),
            pl.BlockSpec(b2c.shape, lambda i: (0, 0)),
            pl.BlockSpec(w3p.shape, lambda i: (0, 0)),
            pl.BlockSpec(b3p.shape, lambda i: (0, 0)),
        ],
        out_specs=(out_bs, out_bs, out_bs),
        compiler_params=pltpu.CompilerParams(
            dimension_semantics=("parallel",),   # v7x: shard batch over 2 TCs
            vmem_limit_bytes=32 * 1024 * 1024,   # explicit (v7x has 64 MiB VMEM)
        ),
    )(x_flat, w1s, b1c, w2c, b2c, w3p, b3p)

    return (z_pad[:, :, :LATENT_DIM],
            z2_pad[:, :, :LATENT_DIM],
            zr_pad[:, :, :LATENT_DIM])


# --------------------------------------------------------------------------
# Pure-JAX reference (mirrors the PyTorch forward) for the f32 cross-check
# --------------------------------------------------------------------------
def _reference_encoder(x, params):
    B, T, C, H, W = x.shape
    w1, b1, w2, b2, w3, b3 = params
    hi = jax.lax.Precision.HIGHEST
    xs = jnp.sum(x, axis=2).reshape(B * T, H * W)     # channel-sum (keepdim squeezed)
    h1 = jnp.maximum(jnp.dot(xs, w1, precision=hi) + b1, 0.0)
    h2 = jnp.maximum(jnp.dot(h1, w2, precision=hi) + b2, 0.0)
    return (jnp.dot(h2, w3, precision=hi) + b3).reshape(B, T, LATENT_DIM)


def _reference_rollout(z, k, c, dt):
    T = z.shape[1]
    z2 = [z[:, 0], z[:, 1]]
    zr = [z[:, 0], z[:, 1]]
    for i in range(T - 2):
        zr.append(_phys_step(z[:, i], z[:, i + 1], k, c, dt))
        z2.append(_phys_step(z2[i], z2[i + 1], k, c, dt))
    return jnp.stack(z2, axis=1), jnp.stack(zr, axis=1)


if __name__ == "__main__":
    key = jax.random.PRNGKey(0)
    B, T, C, S = 2, 8, 2, 16          # batch, frames, channels, spatial (in_size)
    HW = S * S

    kx, k1, k2, k3, kb1, kb2, kb3 = jax.random.split(key, 7)
    x = jax.random.normal(kx, (B, T, C, S, S), dtype=jnp.float32)

    def lin_w(kw, fan_in, fan_out):
        bound = 1.0 / float(fan_in) ** 0.5
        return jax.random.uniform(kw, (fan_in, fan_out), jnp.float32, -bound, bound)

    def lin_b(kb, fan_in, fan_out):
        bound = 1.0 / float(fan_in) ** 0.5
        return jax.random.uniform(kb, (1, fan_out), jnp.float32, -bound, bound)

    params = (
        lin_w(k1, HW, HIDDEN1), lin_b(kb1, HW, HIDDEN1),
        lin_w(k2, HIDDEN1, HIDDEN2), lin_b(kb2, HIDDEN1, HIDDEN2),
        lin_w(k3, HIDDEN2, LATENT_DIM), lin_b(kb3, HIDDEN2, LATENT_DIM),
    )

    dt = 0.2
    k_spring, c_damp = 1.5, 0.3       # deterministic Damped_oscillation params

    # ---- f32 run: faithful path, cross-checked against pure JAX -----------
    z32, z2_32, zr32 = end_phys_multiple_forward(
        x, params, k_spring=k_spring, c_damp=c_damp, dt=dt,
        matmul_dtype=jnp.float32)
    jax.block_until_ready((z32, z2_32, zr32))

    z_want = _reference_encoder(x, params)
    z2_want, zr_want = _reference_rollout(z32, k_spring, c_damp, dt)
    assert z32.shape == (B, T, LATENT_DIM)
    assert jnp.allclose(z32, z_want, rtol=2e-2, atol=2e-2), "encoder mismatch"
    assert jnp.allclose(z2_32, z2_want, rtol=1e-3, atol=1e-3), "z2_phys mismatch"
    assert jnp.allclose(zr32, zr_want, rtol=1e-3, atol=1e-3), "z_renorm mismatch"

    # ---- bf16-matmul run (v6e/v7x recommendation): halves x HBM traffic ---
    z, z2_phys, z_renorm = end_phys_multiple_forward(
        x, params, k_spring=k_spring, c_damp=c_damp, dt=dt,
        matmul_dtype=jnp.bfloat16)
    jax.block_until_ready((z, z2_phys, z_renorm))

    assert z.shape == (B, T, LATENT_DIM)
    assert z2_phys.shape == (B, T, LATENT_DIM)
    assert z_renorm.shape == (B, T, LATENT_DIM)
    assert all(bool(jnp.all(jnp.isfinite(a))) for a in (z, z2_phys, z_renorm))
    print("KERNEL_OK")
</pallas_src>

<mosaic_0001>
module attributes {stable_mosaic.version = 11 : i64} {
  func.func @_fused_kernel(%arg0: i32, %arg1: memref<16x512xf32, #tpu.memory_space<vmem>>, %arg2: memref<512x128xf32, #tpu.memory_space<vmem>>, %arg3: memref<1x128xf32, #tpu.memory_space<vmem>>, %arg4: memref<128x128xf32, #tpu.memory_space<vmem>>, %arg5: memref<1x128xf32, #tpu.memory_space<vmem>>, %arg6: memref<128x128xf32, #tpu.memory_space<vmem>>, %arg7: memref<1x128xf32, #tpu.memory_space<vmem>>, %arg8: memref<2x8x128xf32, #tpu.memory_space<vmem>>, %arg9: memref<2x8x128xf32, #tpu.memory_space<vmem>>, %arg10: memref<2x8x128xf32, #tpu.memory_space<vmem>>) attributes {dimension_semantics = [#tpu.dimension_semantics<parallel>], iteration_bounds = array<i64: 1>, scalar_prefetch = 0 : i64, scratch_operands = 0 : i64, tpu.core_type = #tpu.core_type<tc>, window_params = [{transform_indices = @transform_0, window_bounds = array<i64: 16, 512>}, {pipeline_mode = #tpu.pipeline_mode<synchronous>, transform_indices = @transform_1, window_bounds = array<i64: 512, 128>}, {pipeline_mode = #tpu.pipeline_mode<synchronous>, transform_indices = @transform_2, window_bounds = array<i64: 1, 128>}, {pipeline_mode = #tpu.pipeline_mode<synchronous>, transform_indices = @transform_3, window_bounds = array<i64: 128, 128>}, {pipeline_mode = #tpu.pipeline_mode<synchronous>, transform_indices = @transform_4, window_bounds = array<i64: 1, 128>}, {pipeline_mode = #tpu.pipeline_mode<synchronous>, transform_indices = @transform_5, window_bounds = array<i64: 128, 128>}, {pipeline_mode = #tpu.pipeline_mode<synchronous>, transform_indices = @transform_6, window_bounds = array<i64: 1, 128>}, {transform_indices = @transform_7, window_bounds = array<i64: 2, 8, 128>}, {transform_indices = @transform_8, window_bounds = array<i64: 2, 8, 128>}, {transform_indices = @transform_9, window_bounds = array<i64: 2, 8, 128>}]} {
    %c0 = arith.constant 0 : index
    %c0_0 = arith.constant 0 : index
    %0 = vector.load %arg1[%c0, %c0_0] : memref<16x512xf32, #tpu.memory_space<vmem>>, vector<16x512xf32>
    %c0_1 = arith.constant 0 : index
    %c0_2 = arith.constant 0 : index
    %1 = vector.load %arg2[%c0_1, %c0_2] : memref<512x128xf32, #tpu.memory_space<vmem>>, vector<512x128xf32>
    %cst = arith.constant dense<0.000000e+00> : vector<16x128xf32>
    %2 = tpu.matmul %0, %1, %cst {dimension_numbers = #tpu.dot_dimension_numbers<[1], [0], [0], [1], [0, 0, 1, 1], [], []>} : vector<16x512xf32>, vector<512x128xf32>, vector<16x128xf32> -> vector<16x128xf32>
    %c0_3 = arith.constant 0 : index
    %c0_4 = arith.constant 0 : index
    %3 = vector.load %arg3[%c0_3, %c0_4] : memref<1x128xf32, #tpu.memory_space<vmem>>, vector<1x128xf32>
    %4 = vector.broadcast %3 : vector<1x128xf32> to vector<16x128xf32>
    %5 = arith.addf %2, %4 : vector<16x128xf32>
    %cst_5 = arith.constant 0.000000e+00 : f32
    %6 = vector.broadcast %cst_5 : f32 to vector<16x128xf32>
    %7 = arith.maximumf %5, %6 : vector<16x128xf32>
    %c0_6 = arith.constant 0 : index
    %c0_7 = arith.constant 0 : index
    %8 = vector.load %arg4[%c0_6, %c0_7] : memref<128x128xf32, #tpu.memory_space<vmem>>, vector<128x128xf32>
    %cst_8 = arith.constant dense<0.000000e+00> : vector<16x128xf32>
    %9 = tpu.matmul %7, %8, %cst_8 {dimension_numbers = #tpu.dot_dimension_numbers<[1], [0], [0], [1], [0, 0, 1, 1], [], []>} : vector<16x128xf32>, vector<128x128xf32>, vector<16x128xf32> -> vector<16x128xf32>
    %c0_9 = arith.constant 0 : index
    %c0_10 = arith.constant 0 : index
    %10 = vector.load %arg5[%c0_9, %c0_10] : memref<1x128xf32, #tpu.memory_space<vmem>>, vector<1x128xf32>
    %11 = vector.broadcast %10 : vector<1x128xf32> to vector<16x128xf32>
    %12 = arith.addf %9, %11 : vector<16x128xf32>
    %cst_11 = arith.constant 0.000000e+00 : f32
    %13 = vector.broadcast %cst_11 : f32 to vector<16x128xf32>
    %14 = arith.maximumf %12, %13 : vector<16x128xf32>
    %c0_12 = arith.constant 0 : index
    %c0_13 = arith.constant 0 : index
    %15 = vector.load %arg6[%c0_12, %c0_13] : memref<128x128xf32, #tpu.memory_space<vmem>>, vector<128x128xf32>
    %cst_14 = arith.constant dense<0.000000e+00> : vector<16x128xf32>
    %16 = tpu.matmul %14, %15, %cst_14 {dimension_numbers = #tpu.dot_dimension_numbers<[1], [0], [0], [1], [0, 0, 1, 1], [], []>} : vector<16x128xf32>, vector<128x128xf32>, vector<16x128xf32> -> vector<16x128xf32>
    %c0_15 = arith.constant 0 : index
    %c0_16 = arith.constant 0 : index
    %17 = vector.load %arg7[%c0_15, %c0_16] : memref<1x128xf32, #tpu.memory_space<vmem>>, vector<1x128xf32>
    %18 = vector.broadcast %17 : vector<1x128xf32> to vector<16x128xf32>
    %19 = arith.addf %16, %18 : vector<16x128xf32>
    %20 = vector.shape_cast %19 : vector<16x128xf32> to vector<2x8x128xf32>
    %c0_17 = arith.constant 0 : index
    %c0_18 = arith.constant 0 : index
    %c0_19 = arith.constant 0 : index
    %21 = vector.load %arg8[%c0_17, %c0_18, %c0_19] : memref<2x8x128xf32, #tpu.memory_space<vmem>>, vector<2x8x128xf32>
    tpu.vector_store %arg8[%c0_17, %c0_18, %c0_19], %20 {strides = array<i32>} : memref<2x8x128xf32, #tpu.memory_space<vmem>>, vector<2x8x128xf32>,
    %22 = vector.extract_strided_slice %20 {offsets = [0, 0, 0], sizes = [2, 2, 128], strides = [1, 1, 1]} : vector<2x8x128xf32> to vector<2x2x128xf32>
    %c0_20 = arith.constant 0 : index
    %c0_21 = arith.constant 0 : index
    %c0_22 = arith.constant 0 : index
    %23 = vector.load %arg10[%c0_20, %c0_21, %c0_22] : memref<2x8x128xf32, #tpu.memory_space<vmem>>, vector<2x2x128xf32>
    tpu.vector_store %arg10[%c0_20, %c0_21, %c0_22], %22 {strides = array<i32>} : memref<2x8x128xf32, #tpu.memory_space<vmem>>, vector<2x2x128xf32>,
    %24 = vector.extract_strided_slice %20 {offsets = [0, 0, 0], sizes = [2, 6, 128], strides = [1, 1, 1]} : vector<2x8x128xf32> to vector<2x6x128xf32>
    %25 = vector.extract_strided_slice %20 {offsets = [0, 1, 0], sizes = [2, 6, 128], strides = [1, 1, 1]} : vector<2x8x128xf32> to vector<2x6x128xf32>
    %26 = arith.subf %25, %24 : vector<2x6x128xf32>
    %cst_23 = arith.constant 2.000000e-01 : f32
    %27 = vector.broadcast %cst_23 : f32 to vector<2x6x128xf32>
    %28 = arith.divf %26, %27 : vector<2x6x128xf32>
    %cst_24 = arith.constant -1.500000e+00 : f32
    %29 = vector.broadcast %cst_24 : f32 to vector<2x6x128xf32>
    %30 = arith.mulf %29, %25 : vector<2x6x128xf32>
    %cst_25 = arith.constant 3.000000e-01 : f32
    %31 = vector.broadcast %cst_25 : f32 to vector<2x6x128xf32>
    %32 = arith.mulf %31, %28 : vector<2x6x128xf32>
    %33 = arith.subf %30, %32 : vector<2x6x128xf32>
    %cst_26 = arith.constant 2.000000e-01 : f32
    %34 = vector.broadcast %cst_26 : f32 to vector<2x6x128xf32>
    %35 = arith.mulf %28, %34 : vector<2x6x128xf32>
    %36 = arith.addf %25, %35 : vector<2x6x128xf32>
    %cst_27 = arith.constant 2.000000e-01 : f32
    %37 = vector.broadcast %cst_27 : f32 to vector<2x6x128xf32>
    %38 = arith.mulf %33, %37 : vector<2x6x128xf32>
    %cst_28 = arith.constant 2.000000e-01 : f32
    %39 = vector.broadcast %cst_28 : f32 to vector<2x6x128xf32>
    %40 = arith.mulf %38, %39 : vector<2x6x128xf32>
    %41 = arith.addf %36, %40 : vector<2x6x128xf32>
    %c0_29 = arith.constant 0 : index
    %c2 = arith.constant 2 : index
    %c0_30 = arith.constant 0 : index
    %42 = vector.load %arg10[%c0_29, %c2, %c0_30] : memref<2x8x128xf32, #tpu.memory_space<vmem>>, vector<2x6x128xf32>
    tpu.vector_store %arg10[%c0_29, %c2, %c0_30], %41 {strides = array<i32>} : memref<2x8x128xf32, #tpu.memory_space<vmem>>, vector<2x6x128xf32>,
    %43 = vector.extract_strided_slice %20 {offsets = [0, 0, 0], sizes = [2, 2, 128], strides = [1, 1, 1]} : vector<2x8x128xf32> to vector<2x2x128xf32>
    %c0_31 = arith.constant 0 : index
    %c0_32 = arith.constant 0 : index
    %c0_33 = arith.constant 0 : index
    %44 = vector.load %arg9[%c0_31, %c0_32, %c0_33] : memref<2x8x128xf32, #tpu.memory_space<vmem>>, vector<2x2x128xf32>
    tpu.vector_store %arg9[%c0_31, %c0_32, %c0_33], %43 {strides = array<i32>} : memref<2x8x128xf32, #tpu.memory_space<vmem>>, vector<2x2x128xf32>,
    %45 = vector.extract_strided_slice %20 {offsets = [0, 0, 0], sizes = [2, 1, 128], strides = [1, 1, 1]} : vector<2x8x128xf32> to vector<2x1x128xf32>
    %46 = vector.shape_cast %45 : vector<2x1x128xf32> to vector<2x128xf32>
    %47 = vector.extract_strided_slice %20 {offsets = [0, 1, 0], sizes = [2, 1, 128], strides = [1, 1, 1]} : vector<2x8x128xf32> to vector<2x1x128xf32>
    %48 = vector.shape_cast %47 : vector<2x1x128xf32> to vector<2x128xf32>
    %49 = arith.subf %48, %46 : vector<2x128xf32>
    %cst_34 = arith.constant 2.000000e-01 : f32
    %50 = vector.broadcast %cst_34 : f32 to vector<2x128xf32>
    %51 = arith.divf %49, %50 : vector<2x128xf32>
    %cst_35 = arith.constant -1.500000e+00 : f32
    %52 = vector.broadcast %cst_35 : f32 to vector<2x128xf32>
    %53 = arith.mulf %52, %48 : vector<2x128xf32>
    %cst_36 = arith.constant 3.000000e-01 : f32
    %54 = vector.broadcast %cst_36 : f32 to vector<2x128xf32>
    %55 = arith.mulf %54, %51 : vector<2x128xf32>
    %56 = arith.subf %53, %55 : vector<2x128xf32>
    %cst_37 = arith.constant 2.000000e-01 : f32
    %57 = vector.broadcast %cst_37 : f32 to vector<2x128xf32>
    %58 = arith.mulf %51, %57 : vector<2x128xf32>
    %59 = arith.addf %48, %58 : vector<2x128xf32>
    %cst_38 = arith.constant 2.000000e-01 : f32
    %60 = vector.broadcast %cst_38 : f32 to vector<2x128xf32>
    %61 = arith.mulf %56, %60 : vector<2x128xf32>
    %cst_39 = arith.constant 2.000000e-01 : f32
    %62 = vector.broadcast %cst_39 : f32 to vector<2x128xf32>
    %63 = arith.mulf %61, %62 : vector<2x128xf32>
    %64 = arith.addf %59, %63 : vector<2x128xf32>
    %c0_40 = arith.constant 0 : index
    %c2_41 = arith.constant 2 : index
    %c0_42 = arith.constant 0 : index
    %65 = vector.load %arg9[%c0_40, %c2_41, %c0_42] : memref<2x8x128xf32, #tpu.memory_space<vmem>>, vector<2x1x128xf32>
    %66 = vector.shape_cast %65 : vector<2x1x128xf32> to vector<2x128xf32>
    %67 = vector.shape_cast %64 : vector<2x128xf32> to vector<2x1x128xf32>
    tpu.vector_store %arg9[%c0_40, %c2_41, %c0_42], %67 {strides = array<i32>} : memref<2x8x128xf32, #tpu.memory_space<vmem>>, vector<2x1x128xf32>,
    %68 = arith.subf %64, %48 : vector<2x128xf32>
    %cst_43 = arith.constant 2.000000e-01 : f32
    %69 = vector.broadcast %cst_43 : f32 to vector<2x128xf32>
    %70 = arith.divf %68, %69 : vector<2x128xf32>
    %cst_44 = arith.constant -1.500000e+00 : f32
    %71 = vector.broadcast %cst_44 : f32 to vector<2x128xf32>
    %72 = arith.mulf %71, %64 : vector<2x128xf32>
    %cst_45 = arith.constant 3.000000e-01 : f32
    %73 = vector.broadcast %cst_45 : f32 to vector<2x128xf32>
    %74 = arith.mulf %73, %70 : vector<2x128xf32>
    %75 = arith.subf %72, %74 : vector<2x128xf32>
    %cst_46 = arith.constant 2.000000e-01 : f32
    %76 = vector.broadcast %cst_46 : f32 to vector<2x128xf32>
    %77 = arith.mulf %70, %76 : vector<2x128xf32>
    %78 = arith.addf %64, %77 : vector<2x128xf32>
    %cst_47 = arith.constant 2.000000e-01 : f32
    %79 = vector.broadcast %cst_47 : f32 to vector<2x128xf32>
    %80 = arith.mulf %75, %79 : vector<2x128xf32>
    %cst_48 = arith.constant 2.000000e-01 : f32
    %81 = vector.broadcast %cst_48 : f32 to vector<2x128xf32>
    %82 = arith.mulf %80, %81 : vector<2x128xf32>
    %83 = arith.addf %78, %82 : vector<2x128xf32>
    %c0_49 = arith.constant 0 : index
    %c3 = arith.constant 3 : index
    %c0_50 = arith.constant 0 : index
    %84 = vector.load %arg9[%c0_49, %c3, %c0_50] : memref<2x8x128xf32, #tpu.memory_space<vmem>>, vector<2x1x128xf32>
    %85 = vector.shape_cast %84 : vector<2x1x128xf32> to vector<2x128xf32>
    %86 = vector.shape_cast %83 : vector<2x128xf32> to vector<2x1x128xf32>
    tpu.vector_store %arg9[%c0_49, %c3, %c0_50], %86 {strides = array<i32>} : memref<2x8x128xf32, #tpu.memory_space<vmem>>, vector<2x1x128xf32>,
    %87 = arith.subf %83, %64 : vector<2x128xf32>
    %cst_51 = arith.constant 2.000000e-01 : f32
    %88 = vector.broadcast %cst_51 : f32 to vector<2x128xf32>
    %89 = arith.divf %87, %88 : vector<2x128xf32>
    %cst_52 = arith.constant -1.500000e+00 : f32
    %90 = vector.broadcast %cst_52 : f32 to vector<2x128xf32>
    %91 = arith.mulf %90, %83 : vector<2x128xf32>
    %cst_53 = arith.constant 3.000000e-01 : f32
    %92 = vector.broadcast %cst_53 : f32 to vector<2x128xf32>
    %93 = arith.mulf %92, %89 : vector<2x128xf32>
    %94 = arith.subf %91, %93 : vector<2x128xf32>
    %cst_54 = arith.constant 2.000000e-01 : f32
    %95 = vector.broadcast %cst_54 : f32 to vector<2x128xf32>
    %96 = arith.mulf %89, %95 : vector<2x128xf32>
    %97 = arith.addf %83, %96 : vector<2x128xf32>
    %cst_55 = arith.constant 2.000000e-01 : f32
    %98 = vector.broadcast %cst_55 : f32 to vector<2x128xf32>
    %99 = arith.mulf %94, %98 : vector<2x128xf32>
    %cst_56 = arith.constant 2.000000e-01 : f32
    %100 = vector.broadcast %cst_56 : f32 to vector<2x128xf32>
    %101 = arith.mulf %99, %100 : vector<2x128xf32>
    %102 = arith.addf %97, %101 : vector<2x128xf32>
    %c0_57 = arith.constant 0 : index
    %c4 = arith.constant 4 : index
    %c0_58 = arith.constant 0 : index
    %103 = vector.load %arg9[%c0_57, %c4, %c0_58] : memref<2x8x128xf32, #tpu.memory_space<vmem>>, vector<2x1x128xf32>
    %104 = vector.shape_cast %103 : vector<2x1x128xf32> to vector<2x128xf32>
    %105 = vector.shape_cast %102 : vector<2x128xf32> to vector<2x1x128xf32>
    tpu.vector_store %arg9[%c0_57, %c4, %c0_58], %105 {strides = array<i32>} : memref<2x8x128xf32, #tpu.memory_space<vmem>>, vector<2x1x128xf32>,
    %106 = arith.subf %102, %83 : vector<2x128xf32>
    %cst_59 = arith.constant 2.000000e-01 : f32
    %107 = vector.broadcast %cst_59 : f32 to vector<2x128xf32>
    %108 = arith.divf %106, %107 : vector<2x128xf32>
    %cst_60 = arith.constant -1.500000e+00 : f32
    %109 = vector.broadcast %cst_60 : f32 to vector<2x128xf32>
    %110 = arith.mulf %109, %102 : vector<2x128xf32>
    %cst_61 = arith.constant 3.000000e-01 : f32
    %111 = vector.broadcast %cst_61 : f32 to vector<2x128xf32>
    %112 = arith.mulf %111, %108 : vector<2x128xf32>
    %113 = arith.subf %110, %112 : vector<2x128xf32>
    %cst_62 = arith.constant 2.000000e-01 : f32
    %114 = vector.broadcast %cst_62 : f32 to vector<2x128xf32>
    %115 = arith.mulf %108, %114 : vector<2x128xf32>
    %116 = arith.addf %102, %115 : vector<2x128xf32>
    %cst_63 = arith.constant 2.000000e-01 : f32
    %117 = vector.broadcast %cst_63 : f32 to vector<2x128xf32>
    %118 = arith.mulf %113, %117 : vector<2x128xf32>
    %cst_64 = arith.constant 2.000000e-01 : f32
    %119 = vector.broadcast %cst_64 : f32 to vector<2x128xf32>
    %120 = arith.mulf %118, %119 : vector<2x128xf32>
    %121 = arith.addf %116, %120 : vector<2x128xf32>
    %c0_65 = arith.constant 0 : index
    %c5 = arith.constant 5 : index
    %c0_66 = arith.constant 0 : index
    %122 = vector.load %arg9[%c0_65, %c5, %c0_66] : memref<2x8x128xf32, #tpu.memory_space<vmem>>, vector<2x1x128xf32>
    %123 = vector.shape_cast %122 : vector<2x1x128xf32> to vector<2x128xf32>
    %124 = vector.shape_cast %121 : vector<2x128xf32> to vector<2x1x128xf32>
    tpu.vector_store %arg9[%c0_65, %c5, %c0_66], %124 {strides = array<i32>} : memref<2x8x128xf32, #tpu.memory_space<vmem>>, vector<2x1x128xf32>,
    %125 = arith.subf %121, %102 : vector<2x128xf32>
    %cst_67 = arith.constant 2.000000e-01 : f32
    %126 = vector.broadcast %cst_67 : f32 to vector<2x128xf32>
    %127 = arith.divf %125, %126 : vector<2x128xf32>
    %cst_68 = arith.constant -1.500000e+00 : f32
    %128 = vector.broadcast %cst_68 : f32 to vector<2x128xf32>
    %129 = arith.mulf %128, %121 : vector<2x128xf32>
    %cst_69 = arith.constant 3.000000e-01 : f32
    %130 = vector.broadcast %cst_69 : f32 to vector<2x128xf32>
    %131 = arith.mulf %130, %127 : vector<2x128xf32>
    %132 = arith.subf %129, %131 : vector<2x128xf32>
    %cst_70 = arith.constant 2.000000e-01 : f32
    %133 = vector.broadcast %cst_70 : f32 to vector<2x128xf32>
    %134 = arith.mulf %127, %133 : vector<2x128xf32>
    %135 = arith.addf %121, %134 : vector<2x128xf32>
    %cst_71 = arith.constant 2.000000e-01 : f32
    %136 = vector.broadcast %cst_71 : f32 to vector<2x128xf32>
    %137 = arith.mulf %132, %136 : vector<2x128xf32>
    %cst_72 = arith.constant 2.000000e-01 : f32
    %138 = vector.broadcast %cst_72 : f32 to vector<2x128xf32>
    %139 = arith.mulf %137, %138 : vector<2x128xf32>
    %140 = arith.addf %135, %139 : vector<2x128xf32>
    %c0_73 = arith.constant 0 : index
    %c6 = arith.constant 6 : index
    %c0_74 = arith.constant 0 : index
    %141 = vector.load %arg9[%c0_73, %c6, %c0_74] : memref<2x8x128xf32, #tpu.memory_space<vmem>>, vector<2x1x128xf32>
    %142 = vector.shape_cast %141 : vector<2x1x128xf32> to vector<2x128xf32>
    %143 = vector.shape_cast %140 : vector<2x128xf32> to vector<2x1x128xf32>
    tpu.vector_store %arg9[%c0_73, %c6, %c0_74], %143 {strides = array<i32>} : memref<2x8x128xf32, #tpu.memory_space<vmem>>, vector<2x1x128xf32>,
    %144 = arith.subf %140, %121 : vector<2x128xf32>
    %cst_75 = arith.constant 2.000000e-01 : f32
    %145 = vector.broadcast %cst_75 : f32 to vector<2x128xf32>
    %146 = arith.divf %144, %145 : vector<2x128xf32>
    %cst_76 = arith.constant -1.500000e+00 : f32
    %147 = vector.broadcast %cst_76 : f32 to vector<2x128xf32>
    %148 = arith.mulf %147, %140 : vector<2x128xf32>
    %cst_77 = arith.constant 3.000000e-01 : f32
    %149 = vector.broadcast %cst_77 : f32 to vector<2x128xf32>
    %150 = arith.mulf %149, %146 : vector<2x128xf32>
    %151 = arith.subf %148, %150 : vector<2x128xf32>
    %cst_78 = arith.constant 2.000000e-01 : f32
    %152 = vector.broadcast %cst_78 : f32 to vector<2x128xf32>
    %153 = arith.mulf %146, %152 : vector<2x128xf32>
    %154 = arith.addf %140, %153 : vector<2x128xf32>
    %cst_79 = arith.constant 2.000000e-01 : f32
    %155 = vector.broadcast %cst_79 : f32 to vector<2x128xf32>
    %156 = arith.mulf %151, %155 : vector<2x128xf32>
    %cst_80 = arith.constant 2.000000e-01 : f32
    %157 = vector.broadcast %cst_80 : f32 to vector<2x128xf32>
    %158 = arith.mulf %156, %157 : vector<2x128xf32>
    %159 = arith.addf %154, %158 : vector<2x128xf32>
    %c0_81 = arith.constant 0 : index
    %c7 = arith.constant 7 : index
    %c0_82 = arith.constant 0 : index
    %160 = vector.load %arg9[%c0_81, %c7, %c0_82] : memref<2x8x128xf32, #tpu.memory_space<vmem>>, vector<2x1x128xf32>
    %161 = vector.shape_cast %160 : vector<2x1x128xf32> to vector<2x128xf32>
    %162 = vector.shape_cast %159 : vector<2x128xf32> to vector<2x1x128xf32>
    tpu.vector_store %arg9[%c0_81, %c7, %c0_82], %162 {strides = array<i32>} : memref<2x8x128xf32, #tpu.memory_space<vmem>>, vector<2x1x128xf32>,
    return
  }
  func.func @transform_0(%arg0: i32) -> (i32, i32) {
    %c0_i32 = arith.constant 0 : i32
    %c0_i32_0 = arith.constant 0 : i32
    return %arg0, %c0_i32 : i32, i32
  }
  func.func @transform_1(%arg0: i32) -> (i32, i32) {
    %c0_i32 = arith.constant 0 : i32
    %c0_i32_0 = arith.constant 0 : i32
    %c0_i32_1 = arith.constant 0 : i32
    return %c0_i32, %c0_i32_0 : i32, i32
  }
  func.func @transform_2(%arg0: i32) -> (i32, i32) {
    %c0_i32 = arith.constant 0 : i32
    %c0_i32_0 = arith.constant 0 : i32
    %c0_i32_1 = arith.constant 0 : i32
    return %c0_i32, %c0_i32_0 : i32, i32
  }
  func.func @transform_3(%arg0: i32) -> (i32, i32) {
    %c0_i32 = arith.constant 0 : i32
    %c0_i32_0 = arith.constant 0 : i32
    %c0_i32_1 = arith.constant 0 : i32
    return %c0_i32, %c0_i32_0 : i32, i32
  }
  func.func @transform_4(%arg0: i32) -> (i32, i32) {
    %c0_i32 = arith.constant 0 : i32
    %c0_i32_0 = arith.constant 0 : i32
    %c0_i32_1 = arith.constant 0 : i32
    return %c0_i32, %c0_i32_0 : i32, i32
  }
  func.func @transform_5(%arg0: i32) -> (i32, i32) {
    %c0_i32 = arith.constant 0 : i32
    %c0_i32_0 = arith.constant 0 : i32
    %c0_i32_1 = arith.constant 0 : i32
    return %c0_i32, %c0_i32_0 : i32, i32
  }
  func.func @transform_6(%arg0: i32) -> (i32, i32) {
    %c0_i32 = arith.constant 0 : i32
    %c0_i32_0 = arith.constant 0 : i32
    %c0_i32_1 = arith.constant 0 : i32
    return %c0_i32, %c0_i32_0 : i32, i32
  }
  func.func @transform_7(%arg0: i32) -> (i32, i32, i32) {
    %c0_i32 = arith.constant 0 : i32
    %c0_i32_0 = arith.constant 0 : i32
    %c0_i32_1 = arith.constant 0 : i32
    return %arg0, %c0_i32, %c0_i32_0 : i32, i32, i32
  }
  func.func @transform_8(%arg0: i32) -> (i32, i32, i32) {
    %c0_i32 = arith.constant 0 : i32
    %c0_i32_0 = arith.constant 0 : i32
    %c0_i32_1 = arith.constant 0 : i32
    return %arg0, %c0_i32, %c0_i32_0 : i32, i32, i32
  }
  func.func @transform_9(%arg0: i32) -> (i32, i32, i32) {
    %c0_i32 = arith.constant 0 : i32
    %c0_i32_0 = arith.constant 0 : i32
    %c0_i32_1 = arith.constant 0 : i32
    return %arg0, %c0_i32, %c0_i32_0 : i32, i32, i32
  }
}

</mosaic_0001>

<llo_original>
// kernel: tpu_custom_call.1
$region0: #{tpu_custom_call.1}
  #allocation0 [shape = 'u32[]', space=smem, size = 0x4, offset = 0x4, fixed_abs, tag = 'smem constant byte address 0x4 - core index']
  #allocation1 [shape = 'u32[144,128]{1,0:T(1,128)}', space=vmem, size = 0x12000, scoped, tag = 'internal scratch']
  %s0 = inlined_call_operand.hbm [shape: f32[16,512], index: 0, kind: input, shape index: {}]
  %s1 = inlined_call_operand.hbm [shape: f32[512,128], index: 1, kind: input, shape index: {}]
  %s2 = inlined_call_operand.vmem [shape: f32[1,128], index: 2, kind: input, shape index: {}]
  %s3 = inlined_call_operand.hbm [shape: f32[128,128], index: 3, kind: input, shape index: {}]
  %s4 = inlined_call_operand.vmem [shape: f32[1,128], index: 4, kind: input, shape index: {}]
  %s5 = inlined_call_operand.hbm [shape: f32[128,128], index: 5, kind: input, shape index: {}]
  %s6 = inlined_call_operand.vmem [shape: f32[1,128], index: 6, kind: input, shape index: {}]
  %s7 = inlined_call_operand.hbm [shape: f32[2,8,128], index: 7, kind: output, shape index: {0}]
  %s8 = inlined_call_operand.hbm [shape: f32[2,8,128], index: 8, kind: output, shape index: {1}]
  %s9 = inlined_call_operand.hbm [shape: f32[2,8,128], index: 9, kind: output, shape index: {2}]
  %10 = xla_tuple %s7, %s8, %s9
  %s11 = sld [smem:[#allocation0]]
  $region70: #{tpu_custom_call.1} parent=0
    _
  %s13 = ssub.s32 1, %s11
  %s14 = scalar_select 0, %s13, %s11
  $region1: #{tpu_custom_call.1} parent=0
    #allocation2 [shape = 'u8[32768]{0}', space=vmem, size = 0x8000, scoped, tag = 'input window, operand 0, single buffered']
    #allocation3 [shape = 's32[1]{0}', space=sflag, size = 0x4, scoped, tag = 'scoped memory for tpu_custom_call.1']
    #allocation4 [shape = 's32[1]{0}', space=sflag, size = 0x4, scoped, tag = 'scoped memory for tpu_custom_call.1']
    #allocation5 [shape = 'u8[262144]{0}', space=vmem, size = 0x40000, scoped, tag = 'input window, operand 1, single buffered']
    #allocation6 [shape = 's32[1]{0}', space=sflag, size = 0x4, scoped, tag = 'scoped memory for tpu_custom_call.1']
    #allocation7 [shape = 'u8[65536]{0}', space=vmem, size = 0x10000, scoped, tag = 'input window, operand 3, single buffered']
    #allocation8 [shape = 'u8[65536]{0}', space=vmem, size = 0x10000, scoped, tag = 'input window, operand 5, single buffered']
    #allocation9 [shape = 's32[1]{0}', space=sflag, size = 0x4, scoped, tag = 'scoped memory for tpu_custom_call.1']
    #allocation10 [shape = 'u8[8192]{0}', space=vmem, size = 0x2000, scoped, tag = 'output window, operand 0, single buffered']
    #allocation11 [shape = 'u8[8192]{0}', space=vmem, size = 0x2000, scoped, tag = 'output window, operand 1, single buffered']
    #allocation12 [shape = 's32[1]{0}', space=sflag, size = 0x4, scoped, tag = 'scoped memory for tpu_custom_call.1']
    #allocation13 [shape = 'u8[8192]{0}', space=vmem, size = 0x2000, scoped, tag = 'output window, operand 2, single buffered']
    %15 = vsyncpa [#allocation3], 0
    %16 = vsyncpa [#allocation6], 0
    %17 = vsyncpa [#allocation9], 0
    %18 = vsyncpa [#allocation4], 0
    %19 = vsyncpa [#allocation12], 0
    // Predicated region
    $region2: #{tpu_custom_call.1} parent=1 // pred_check
      _
    $region3: #{tpu_custom_call.1} parent=1 // pred_check_branch
      %21 = sbr.rel (0) target = $region5
    $region4: #{tpu_custom_call.1} parent=1 // pred_region
      %s23 = ssub.s32 1024, 1024
      %24 = vsyncadd [#allocation3], %s23
      %s25 = sshll.u32 [#allocation2], 4
      %s26 = int_to_ptr.vmem [resolvable:$true] %s25
      %31 = dma.hbm_to_vmem [thread:$0]  %s0, 1024, %s26, [#allocation3], 512, 512, 32
    $region5: #{tpu_custom_call.1} parent=1 // pred_fallthru
      _
    // Predicated region
    $region6: #{tpu_custom_call.1} parent=1 // pred_check
      _
    $region7: #{tpu_custom_call.1} parent=1 // pred_check_branch
      %33 = sbr.rel (0) target = $region9
    $region8: #{tpu_custom_call.1} parent=1 // pred_region
      %s35 = ssub.s32 8192, 8192
      %36 = vsyncadd [#allocation6], %s35
      %s37 = sshll.u32 [#allocation5], 4
      %s38 = int_to_ptr.vmem [resolvable:$true] %s37
      %43 = dma.hbm_to_vmem [thread:$0]  %s1, 8192, %s38, [#allocation6], 128, 128, 8
    $region9: #{tpu_custom_call.1} parent=1 // pred_fallthru
      _
    // Predicated region
    $region10: #{tpu_custom_call.1} parent=1 // pred_check
      _
    $region11: #{tpu_custom_call.1} parent=1 // pred_check_branch
      %45 = sbr.rel (0) target = $region13
    $region12: #{tpu_custom_call.1} parent=1 // pred_region
      _
    $region13: #{tpu_custom_call.1} parent=1 // pred_fallthru
      _
    // Predicated region
    $region14: #{tpu_custom_call.1} parent=1 // pred_check
      _
    $region15: #{tpu_custom_call.1} parent=1 // pred_check_branch
      %47 = sbr.rel (0) target = $region17
    $region16: #{tpu_custom_call.1} parent=1 // pred_region
      %s49 = ssub.s32 2048, 2048
      %50 = vsyncadd [#allocation6], %s49
      %s51 = sshll.u32 [#allocation7], 4
      %s52 = int_to_ptr.vmem [resolvable:$true] %s51
      %57 = dma.hbm_to_vmem [thread:$0]  %s3, 2048, %s52, [#allocation6], 128, 128, 8
    $region17: #{tpu_custom_call.1} parent=1 // pred_fallthru
      _
    // Predicated region
    $region18: #{tpu_custom_call.1} parent=1 // pred_check
      _
    $region19: #{tpu_custom_call.1} parent=1 // pred_check_branch
      %59 = sbr.rel (0) target = $region21
    $region20: #{tpu_custom_call.1} parent=1 // pred_region
      _
    $region21: #{tpu_custom_call.1} parent=1 // pred_fallthru
      _
    // Predicated region
    $region22: #{tpu_custom_call.1} parent=1 // pred_check
      _
    $region23: #{tpu_custom_call.1} parent=1 // pred_check_branch
      %61 = sbr.rel (0) target = $region25
    $region24: #{tpu_custom_call.1} parent=1 // pred_region
      %s63 = ssub.s32 2048, 2048
      %64 = vsyncadd [#allocation9], %s63
      %s65 = sshll.u32 [#allocation8], 4
      %s66 = int_to_ptr.vmem [resolvable:$true] %s65
      %71 = dma.hbm_to_vmem [thread:$0]  %s5, 2048, %s66, [#allocation9], 128, 128, 8
    $region25: #{tpu_custom_call.1} parent=1 // pred_fallthru
      _
    // Predicated region
    $region26: #{tpu_custom_call.1} parent=1 // pred_check
      _
    $region27: #{tpu_custom_call.1} parent=1 // pred_check_branch
      %73 = sbr.rel (0) target = $region29
    $region28: #{tpu_custom_call.1} parent=1 // pred_region
      _
    $region29: #{tpu_custom_call.1} parent=1 // pred_fallthru
      _
    // Predicated region
    $region30: #{tpu_custom_call.1} parent=1 // pred_check
      _
    $region31: #{tpu_custom_call.1} parent=1 // pred_check_branch
      %75 = sbr.rel (0) target = $region33
    $region32: #{tpu_custom_call.1} parent=1 // pred_region
      %76 = dma.done [#allocation3], 1024
    $region33: #{tpu_custom_call.1} parent=1 // pred_fallthru
      _
    // Predicated region
    $region34: #{tpu_custom_call.1} parent=1 // pred_check
      _
    $region35: #{tpu_custom_call.1} parent=1 // pred_check_branch
      %78 = sbr.rel (0) target = $region37
    $region36: #{tpu_custom_call.1} parent=1 // pred_region
      %79 = dma.done [#allocation6], 8192
    $region37: #{tpu_custom_call.1} parent=1 // pred_fallthru
      _
    // Predicated region
    $region38: #{tpu_custom_call.1} parent=1 // pred_check
      _
    $region39: #{tpu_custom_call.1} parent=1 // pred_check_branch
      %81 = sbr.rel (0) target = $region41
    $region40: #{tpu_custom_call.1} parent=1 // pred_region
      %82 = dma.done [#allocation6], 2048
    $region41: #{tpu_custom_call.1} parent=1 // pred_fallthru
      _
    // Predicated region
    $region42: #{tpu_custom_call.1} parent=1 // pred_check
      _
    $region43: #{tpu_custom_call.1} parent=1 // pred_check_branch
      %84 = sbr.rel (0) target = $region45
    $region44: #{tpu_custom_call.1} parent=1 // pred_region
      %85 = dma.done [#allocation9], 2048
    $region45: #{tpu_custom_call.1} parent=1 // pred_fallthru
      _
    %v86 = vld [vmem:[#allocation2] sm:$0xff]
    %v87 = vld [vmem:[#allocation2 + $0x8] sm:$0xff]
    %v88 = vld [vmem:[#allocation2 + $0x10] sm:$0xff]
    %v89 = vld [vmem:[#allocation2 + $0x18] sm:$0xff]
    %v90 = vld [vmem:[#allocation2 + $0x20] sm:$0xff]
    %v91 = vld [vmem:[#allocation2 + $0x28] sm:$0xff]
    %v92 = vld [vmem:[#allocation2 + $0x30] sm:$0xff]
    %v93 = vld [vmem:[#allocation2 + $0x38] sm:$0xff]
    %v94 = vld [vmem:[#allocation5] sm:$0xff]
    %v95 = vld [vmem:[#allocation5 + $0x8] sm:$0xff]
    %v96 = vld [vmem:[#allocation5 + $0x10] sm:$0xff]
    %v97 = vld [vmem:[#allocation5 + $0x18] sm:$0xff]
    %v98 = vld [vmem:[#allocation5 + $0x20] sm:$0xff]
    %v99 = vld [vmem:[#allocation5 + $0x28] sm:$0xff]
    %v100 = vld [vmem:[#allocation5 + $0x30] sm:$0xff]
    %v101 = vld [vmem:[#allocation5 + $0x38] sm:$0xff]
    %v102 = vld [vmem:[#allocation5 + $0x40] sm:$0xff]
    %v103 = vld [vmem:[#allocation5 + $0x48] sm:$0xff]
    %v104 = vld [vmem:[#allocation5 + $0x50] sm:$0xff]
    %v105 = vld [vmem:[#allocation5 + $0x58] sm:$0xff]
    %v106 = vld [vmem:[#allocation5 + $0x60] sm:$0xff]
    %v107 = vld [vmem:[#allocation5 + $0x68] sm:$0xff]
    %v108 = vld [vmem:[#allocation5 + $0x70] sm:$0xff]
    %v109 = vld [vmem:[#allocation5 + $0x78] sm:$0xff]
    %v110 = vld [vmem:[#allocation5 + $0x80] sm:$0xff]
    %v111 = vld [vmem:[#allocation5 + $0x88] sm:$0xff]
    %v112 = vld [vmem:[#allocation5 + $0x90] sm:$0xff]
    %v113 = vld [vmem:[#allocation5 + $0x98] sm:$0xff]
    %v114 = vld [vmem:[#allocation5 + $0xa0] sm:$0xff]
    %v115 = vld [vmem:[#allocation5 + $0xa8] sm:$0xff]
    %v116 = vld [vmem:[#allocation5 + $0xb0] sm:$0xff]
    %v117 = vld [vmem:[#allocation5 + $0xb8] sm:$0xff]
    %v118 = vld [vmem:[#allocation5 + $0xc0] sm:$0xff]
    %v119 = vld [vmem:[#allocation5 + $0xc8] sm:$0xff]
    %v120 = vld [vmem:[#allocation5 + $0xd0] sm:$0xff]
    %v121 = vld [vmem:[#allocation5 + $0xd8] sm:$0xff]
    %v122 = vld [vmem:[#allocation5 + $0xe0] sm:$0xff]
    %v123 = vld [vmem:[#allocation5 + $0xe8] sm:$0xff]
    %v124 = vld [vmem:[#allocation5 + $0xf0] sm:$0xff]
    %v125 = vld [vmem:[#allocation5 + $0xf8] sm:$0xff]
    %v126 = vld [vmem:[#allocation5 + $0x100] sm:$0xff]
    %v127 = vld [vmem:[#allocation5 + $0x108] sm:$0xff]
    %v128 = vld [vmem:[#allocation5 + $0x110] sm:$0xff]
    %v129 = vld [vmem:[#allocation5 + $0x118] sm:$0xff]
    %v130 = vld [vmem:[#allocation5 + $0x120] sm:$0xff]
    %v131 = vld [vmem:[#allocation5 + $0x128] sm:$0xff]
    %v132 = vld [vmem:[#allocation5 + $0x130] sm:$0xff]
    %v133 = vld [vmem:[#allocation5 + $0x138] sm:$0xff]
    %v134 = vld [vmem:[#allocation5 + $0x140] sm:$0xff]
    %v135 = vld [vmem:[#allocation5 + $0x148] sm:$0xff]
    %v136 = vld [vmem:[#allocation5 + $0x150] sm:$0xff]
    %v137 = vld [vmem:[#allocation5 + $0x158] sm:$0xff]
    %v138 = vld [vmem:[#allocation5 + $0x160] sm:$0xff]
    %v139 = vld [vmem:[#allocation5 + $0x168] sm:$0xff]
    %v140 = vld [vmem:[#allocation5 + $0x170] sm:$0xff]
    %v141 = vld [vmem:[#allocation5 + $0x178] sm:$0xff]
    %v142 = vld [vmem:[#allocation5 + $0x180] sm:$0xff]
    %v143 = vld [vmem:[#allocation5 + $0x188] sm:$0xff]
    %v144 = vld [vmem:[#allocation5 + $0x190] sm:$0xff]
    %v145 = vld [vmem:[#allocation5 + $0x198] sm:$0xff]
    %v146 = vld [vmem:[#allocation5 + $0x1a0] sm:$0xff]
    %v147 = vld [vmem:[#allocation5 + $0x1a8] sm:$0xff]
    %v148 = vld [vmem:[#allocation5 + $0x1b0] sm:$0xff]
    %v149 = vld [vmem:[#allocation5 + $0x1b8] sm:$0xff]
    %v150 = vld [vmem:[#allocation5 + $0x1c0] sm:$0xff]
    %v151 = vld [vmem:[#allocation5 + $0x1c8] sm:$0xff]
    %v152 = vld [vmem:[#allocation5 + $0x1d0] sm:$0xff]
    %v153 = vld [vmem:[#allocation5 + $0x1d8] sm:$0xff]
    %v154 = vld [vmem:[#allocation5 + $0x1e0] sm:$0xff]
    %v155 = vld [vmem:[#allocation5 + $0x1e8] sm:$0xff]
    %v156 = vld [vmem:[#allocation5 + $0x1f0] sm:$0xff]
    %v157 = vld [vmem:[#allocation5 + $0x1f8] sm:$0xff]
    %v158 = vld [vmem:[%s2] sm:$0x1]
    %v160 = vlaneseq
    %v161 = vshrl.u32 %v160, 7
    %v162 = vsub.s32 0, %v161
    %v163 = vrot.slane %v158, %v162
    %165 = vmatprep.subr.mxu0 0.0
    %166 = vmatpush1.msra.mxu0 %v109
    %167 = vmatprep.subr.mxu0 0.0
    %168 = vmatpush1.msra.mxu0 %v108
    %169 = vmatprep.subr.mxu0 0.0
    %170 = vmatpush1.msra.mxu0 %v107
    %171 = vmatprep.subr.mxu0 0.0
    %172 = vmatpush1.msra.mxu0 %v106
    %173 = vmatprep.subr.mxu0 0.0
    %174 = vmatpush1.msra.mxu0 %v105
    %175 = vmatprep.subr.mxu0 0.0
    %176 = vmatpush1.msra.mxu0 %v104
    %177 = vmatprep.subr.mxu0 0.0
    %178 = vmatpush1.msra.mxu0 %v103
    %179 = vmatprep.subr.mxu0 0.0
    %180 = vmatpush1.msra.mxu0 %v102
    %181 = vmatprep.subr.mxu0 0.0
    %182 = vmatpush1.msra.mxu0 %v101
    %183 = vmatprep.subr.mxu0 0.0
    %184 = vmatpush1.msra.mxu0 %v100
    %185 = vmatprep.subr.mxu0 0.0
    %186 = vmatpush1.msra.mxu0 %v99
    %187 = vmatprep.subr.mxu0 0.0
    %188 = vmatpush1.msra.mxu0 %v98
    %189 = vmatprep.subr.mxu0 0.0
    %190 = vmatpush1.msra.mxu0 %v97
    %191 = vmatprep.subr.mxu0 0.0
    %192 = vmatpush1.msra.mxu0 %v96
    %193 = vmatprep.subr.mxu0 0.0
    %194 = vmatpush1.msra.mxu0 %v95
    %195 = vmatprep.subr.mxu0 0.0
    %196 = vmatpush1.msra.mxu0 %v94
    %197 = vmatprep.subr.mxu0 0.0
    %198 = vmatpush2.msra.mxu0 %v125
    %199 = vmatprep.subr.mxu0 0.0
    %200 = vmatpush2.msra.mxu0 %v124
    %201 = vmatprep.subr.mxu0 0.0
    %202 = vmatpush2.msra.mxu0 %v123
    %203 = vmatprep.subr.mxu0 0.0
    %204 = vmatpush2.msra.mxu0 %v122
    %205 = vmatprep.subr.mxu0 0.0
    %206 = vmatpush2.msra.mxu0 %v121
    %207 = vmatprep.subr.mxu0 0.0
    %208 = vmatpush2.msra.mxu0 %v120
    %209 = vmatprep.subr.mxu0 0.0
    %210 = vmatpush2.msra.mxu0 %v119
    %211 = vmatprep.subr.mxu0 0.0
    %212 = vmatpush2.msra.mxu0 %v118
    %213 = vmatprep.subr.mxu0 0.0
    %214 = vmatpush2.msra.mxu0 %v117
    %215 = vmatprep.subr.mxu0 0.0
    %216 = vmatpush2.msra.mxu0 %v116
    %217 = vmatprep.subr.mxu0 0.0
    %218 = vmatpush2.msra.mxu0 %v115
    %219 = vmatprep.subr.mxu0 0.0
    %220 = vmatpush2.msra.mxu0 %v114
    %221 = vmatprep.subr.mxu0 0.0
    %222 = vmatpush2.msra.mxu0 %v113
    %223 = vmatprep.subr.mxu0 0.0
    %224 = vmatpush2.msra.mxu0 %v112
    %225 = vmatprep.subr.mxu0 0.0
    %226 = vmatpush2.msra.mxu0 %v111
    %227 = vmatprep.subr.mxu0 0.0
    %228 = vmatpush2.msra.mxu0 %v110
    %229 = vmatprep.mubr.f32.mxu0 %v87
    %230 = vmatmul.mubr.f32.gmra.mxu0 %v86
    %v231 = vpop.f32.mrf.mxu0
    %v232 = vadd.f32 %v163, %v231
    %v233 = vpop.f32.mrf.mxu0
    %234 = vmatprep.mubr.f32.mxu0 %v91
    %235 = vmatmul.mubr.f32.gmra.mxu0 %v90
    %v236 = vpop.f32.mrf.mxu0
    %v237 = vadd.f32 %v163, %v236
    %v238 = vpop.f32.mrf.mxu0
    %239 = vdwg.mxu0
    %240 = vmatprep.subr.mxu0 0.0
    %241 = vmatpush1.msra.mxu0 %v141
    %242 = vmatprep.subr.mxu0 0.0
    %243 = vmatpush1.msra.mxu0 %v140
    %244 = vmatprep.subr.mxu0 0.0
    %245 = vmatpush1.msra.mxu0 %v139
    %246 = vmatprep.subr.mxu0 0.0
    %247 = vmatpush1.msra.mxu0 %v138
    %248 = vmatprep.subr.mxu0 0.0
    %249 = vmatpush1.msra.mxu0 %v137
    %250 = vmatprep.subr.mxu0 0.0
    %251 = vmatpush1.msra.mxu0 %v136
    %252 = vmatprep.subr.mxu0 0.0
    %253 = vmatpush1.msra.mxu0 %v135
    %254 = vmatprep.subr.mxu0 0.0
    %255 = vmatpush1.msra.mxu0 %v134
    %256 = vmatprep.subr.mxu0 0.0
    %257 = vmatpush1.msra.mxu0 %v133
    %258 = vmatprep.subr.mxu0 0.0
    %259 = vmatpush1.msra.mxu0 %v132
    %260 = vmatprep.subr.mxu0 0.0
    %261 = vmatpush1.msra.mxu0 %v131
    %262 = vmatprep.subr.mxu0 0.0
    %263 = vmatpush1.msra.mxu0 %v130
    %264 = vmatprep.subr.mxu0 0.0
    %265 = vmatpush1.msra.mxu0 %v129
    %266 = vmatprep.subr.mxu0 0.0
    %267 = vmatpush1.msra.mxu0 %v128
    %268 = vmatprep.subr.mxu0 0.0
    %269 = vmatpush1.msra.mxu0 %v127
    %270 = vmatprep.subr.mxu0 0.0
    %271 = vmatpush1.msra.mxu0 %v126
    %272 = vmatprep.subr.mxu0 0.0
    %273 = vmatpush2.msra.mxu0 %v157
    %274 = vmatprep.subr.mxu0 0.0
    %275 = vmatpush2.msra.mxu0 %v156
    %276 = vmatprep.subr.mxu0 0.0
    %277 = vmatpush2.msra.mxu0 %v155
    %278 = vmatprep.subr.mxu0 0.0
    %279 = vmatpush2.msra.mxu0 %v154
    %280 = vmatprep.subr.mxu0 0.0
    %281 = vmatpush2.msra.mxu0 %v153
    %282 = vmatprep.subr.mxu0 0.0
    %283 = vmatpush2.msra.mxu0 %v152
    %284 = vmatprep.subr.mxu0 0.0
    %285 = vmatpush2.msra.mxu0 %v151
    %286 = vmatprep.subr.mxu0 0.0
    %287 = vmatpush2.msra.mxu0 %v150
    %288 = vmatprep.subr.mxu0 0.0
    %289 = vmatpush2.msra.mxu0 %v149
    %290 = vmatprep.subr.mxu0 0.0
    %291 = vmatpush2.msra.mxu0 %v148
    %292 = vmatprep.subr.mxu0 0.0
    %293 = vmatpush2.msra.mxu0 %v147
    %294 = vmatprep.subr.mxu0 0.0
    %295 = vmatpush2.msra.mxu0 %v146
    %296 = vmatprep.subr.mxu0 0.0
    %297 = vmatpush2.msra.mxu0 %v145
    %298 = vmatprep.subr.mxu0 0.0
    %299 = vmatpush2.msra.mxu0 %v144
    %300 = vmatprep.subr.mxu0 0.0
    %301 = vmatpush2.msra.mxu0 %v143
    %302 = vmatprep.subr.mxu0 0.0
    %303 = vmatpush2.msra.mxu0 %v142
    %304 = vmatprep.mubr.f32.mxu0 %v89
    %305 = vmatmul.mubr.f32.gmra.mxu0 %v88
    %v306 = vpop.f32.mrf.mxu0
    %v307 = vadd.f32 %v232, %v306
    %v308 = vpop.f32.mrf.mxu0
    %309 = vmatprep.mubr.f32.mxu0 %v93
    %310 = vmatmul.mubr.f32.gmra.mxu0 %v92
    %v311 = vpop.f32.mrf.mxu0
    %v312 = vadd.f32 %v237, %v311
    %v313 = vpop.f32.mrf.mxu0
    %314 = vdwg.mxu0
    %v315 = vmax.f32 %v307, 0.0
    %v316 = vmax.f32 %v312, 0.0
    %v317 = vld [vmem:[#allocation7] sm:$0xff]
    %v318 = vld [vmem:[#allocation7 + $0x8] sm:$0xff]
    %v319 = vld [vmem:[#allocation7 + $0x10] sm:$0xff]
    %v320 = vld [vmem:[#allocation7 + $0x18] sm:$0xff]
    %v321 = vld [vmem:[#allocation7 + $0x20] sm:$0xff]
    %v322 = vld [vmem:[#allocation7 + $0x28] sm:$0xff]
    %v323 = vld [vmem:[#allocation7 + $0x30] sm:$0xff]
    %v324 = vld [vmem:[#allocation7 + $0x38] sm:$0xff]
    %v325 = vld [vmem:[#allocation7 + $0x40] sm:$0xff]
    %v326 = vld [vmem:[#allocation7 + $0x48] sm:$0xff]
    %v327 = vld [vmem:[#allocation7 + $0x50] sm:$0xff]
    %v328 = vld [vmem:[#allocation7 + $0x58] sm:$0xff]
    %v329 = vld [vmem:[#allocation7 + $0x60] sm:$0xff]
    %v330 = vld [vmem:[#allocation7 + $0x68] sm:$0xff]
    %v331 = vld [vmem:[#allocation7 + $0x70] sm:$0xff]
    %v332 = vld [vmem:[#allocation7 + $0x78] sm:$0xff]
    %v333 = vld [vmem:[%s4] sm:$0x1]
    %v335 = vlaneseq
    %v336 = vshrl.u32 %v335, 7
    %v337 = vsub.s32 0, %v336
    %v338 = vrot.slane %v333, %v337
    %340 = vmatprep.subr.mxu0 0.0
    %341 = vmatpush1.msra.mxu0 %v332
    %342 = vmatprep.subr.mxu0 0.0
    %343 = vmatpush1.msra.mxu0 %v331
    %344 = vmatprep.subr.mxu0 0.0
    %345 = vmatpush1.msra.mxu0 %v330
    %346 = vmatprep.subr.mxu0 0.0
    %347 = vmatpush1.msra.mxu0 %v329
    %348 = vmatprep.subr.mxu0 0.0
    %349 = vmatpush1.msra.mxu0 %v328
    %350 = vmatprep.subr.mxu0 0.0
    %351 = vmatpush1.msra.mxu0 %v327
    %352 = vmatprep.subr.mxu0 0.0
    %353 = vmatpush1.msra.mxu0 %v326
    %354 = vmatprep.subr.mxu0 0.0
    %355 = vmatpush1.msra.mxu0 %v325
    %356 = vmatprep.subr.mxu0 0.0
    %357 = vmatpush1.msra.mxu0 %v324
    %358 = vmatprep.subr.mxu0 0.0
    %359 = vmatpush1.msra.mxu0 %v323
    %360 = vmatprep.subr.mxu0 0.0
    %361 = vmatpush1.msra.mxu0 %v322
    %362 = vmatprep.subr.mxu0 0.0
    %363 = vmatpush1.msra.mxu0 %v321
    %364 = vmatprep.subr.mxu0 0.0
    %365 = vmatpush1.msra.mxu0 %v320
    %366 = vmatprep.subr.mxu0 0.0
    %367 = vmatpush1.msra.mxu0 %v319
    %368 = vmatprep.subr.mxu0 0.0
    %369 = vmatpush1.msra.mxu0 %v318
    %370 = vmatprep.subr.mxu0 0.0
    %371 = vmatpush1.msra.mxu0 %v317
    %372 = vmatprep.subr.mxu0 0.0
    %373 = vmatpush2.msra.mxu0 0.0
    %374 = vmatprep.subr.mxu0 0.0
    %375 = vmatpush2.msra.mxu0 0.0
    %376 = vmatprep.subr.mxu0 0.0
    %377 = vmatpush2.msra.mxu0 0.0
    %378 = vmatprep.subr.mxu0 0.0
    %379 = vmatpush2.msra.mxu0 0.0
    %380 = vmatprep.subr.mxu0 0.0
    %381 = vmatpush2.msra.mxu0 0.0
    %382 = vmatprep.subr.mxu0 0.0
    %383 = vmatpush2.msra.mxu0 0.0
    %384 = vmatprep.subr.mxu0 0.0
    %385 = vmatpush2.msra.mxu0 0.0
    %386 = vmatprep.subr.mxu0 0.0
    %387 = vmatpush2.msra.mxu0 0.0
    %388 = vmatprep.subr.mxu0 0.0
    %389 = vmatpush2.msra.mxu0 0.0
    %390 = vmatprep.subr.mxu0 0.0
    %391 = vmatpush2.msra.mxu0 0.0
    %392 = vmatprep.subr.mxu0 0.0
    %393 = vmatpush2.msra.mxu0 0.0
    %394 = vmatprep.subr.mxu0 0.0
    %395 = vmatpush2.msra.mxu0 0.0
    %396 = vmatprep.subr.mxu0 0.0
    %397 = vmatpush2.msra.mxu0 0.0
    %398 = vmatprep.subr.mxu0 0.0
    %399 = vmatpush2.msra.mxu0 0.0
    %400 = vmatprep.subr.mxu0 0.0
    %401 = vmatpush2.msra.mxu0 0.0
    %402 = vmatprep.subr.mxu0 0.0
    %403 = vmatpush2.msra.mxu0 0.0
    %404 = vmatprep.mubr.f32.mxu0 0.0
    %405 = vmatmul.mubr.f32.gmra.mxu0 %v315
    %v406 = vpop.f32.mrf.mxu0
    %v407 = vadd.f32 %v338, %v406
    %v408 = vpop.f32.mrf.mxu0
    %409 = vmatprep.mubr.f32.mxu0 0.0
    %410 = vmatmul.mubr.f32.gmra.mxu0 %v316
    %v411 = vpop.f32.mrf.mxu0
    %v412 = vadd.f32 %v338, %v411
    %v413 = vpop.f32.mrf.mxu0
    %414 = vdwg.mxu0
    %v415 = vmax.f32 %v407, 0.0
    %v416 = vmax.f32 %v412, 0.0
    %v417 = vld [vmem:[#allocation8] sm:$0xff]
    %v418 = vld [vmem:[#allocation8 + $0x8] sm:$0xff]
    %v419 = vld [vmem:[#allocation8 + $0x10] sm:$0xff]
    %v420 = vld [vmem:[#allocation8 + $0x18] sm:$0xff]
    %v421 = vld [vmem:[#allocation8 + $0x20] sm:$0xff]
    %v422 = vld [vmem:[#allocation8 + $0x28] sm:$0xff]
    %v423 = vld [vmem:[#allocation8 + $0x30] sm:$0xff]
    %v424 = vld [vmem:[#allocation8 + $0x38] sm:$0xff]
    %v425 = vld [vmem:[#allocation8 + $0x40] sm:$0xff]
    %v426 = vld [vmem:[#allocation8 + $0x48] sm:$0xff]
    %v427 = vld [vmem:[#allocation8 + $0x50] sm:$0xff]
    %v428 = vld [vmem:[#allocation8 + $0x58] sm:$0xff]
    %v429 = vld [vmem:[#allocation8 + $0x60] sm:$0xff]
    %v430 = vld [vmem:[#allocation8 + $0x68] sm:$0xff]
    %v431 = vld [vmem:[#allocation8 + $0x70] sm:$0xff]
    %v432 = vld [vmem:[#allocation8 + $0x78] sm:$0xff]
    %v433 = vld [vmem:[%s6] sm:$0x1]
    %v435 = vlaneseq
    %v436 = vshrl.u32 %v435, 7
    %v437 = vsub.s32 0, %v436
    %v438 = vrot.slane %v433, %v437
    %440 = vmatprep.subr.mxu0 0.0
    %441 = vmatpush1.msra.mxu0 %v432
    %442 = vmatprep.subr.mxu0 0.0
    %443 = vmatpush1.msra.mxu0 %v431
    %444 = vmatprep.subr.mxu0 0.0
    %445 = vmatpush1.msra.mxu0 %v430
    %446 = vmatprep.subr.mxu0 0.0
    %447 = vmatpush1.msra.mxu0 %v429
    %448 = vmatprep.subr.mxu0 0.0
    %449 = vmatpush1.msra.mxu0 %v428
    %450 = vmatprep.subr.mxu0 0.0
    %451 = vmatpush1.msra.mxu0 %v427
    %452 = vmatprep.subr.mxu0 0.0
    %453 = vmatpush1.msra.mxu0 %v426
    %454 = vmatprep.subr.mxu0 0.0
    %455 = vmatpush1.msra.mxu0 %v425
    %456 = vmatprep.subr.mxu0 0.0
    %457 = vmatpush1.msra.mxu0 %v424
    %458 = vmatprep.subr.mxu0 0.0
    %459 = vmatpush1.msra.mxu0 %v423
    %460 = vmatprep.subr.mxu0 0.0
    %461 = vmatpush1.msra.mxu0 %v422
    %462 = vmatprep.subr.mxu0 0.0
    %463 = vmatpush1.msra.mxu0 %v421
    %464 = vmatprep.subr.mxu0 0.0
    %465 = vmatpush1.msra.mxu0 %v420
    %466 = vmatprep.subr.mxu0 0.0
    %467 = vmatpush1.msra.mxu0 %v419
    %468 = vmatprep.subr.mxu0 0.0
    %469 = vmatpush1.msra.mxu0 %v418
    %470 = vmatprep.subr.mxu0 0.0
    %471 = vmatpush1.msra.mxu0 %v417
    %472 = vmatprep.subr.mxu0 0.0
    %473 = vmatpush2.msra.mxu0 0.0
    %474 = vmatprep.subr.mxu0 0.0
    %475 = vmatpush2.msra.mxu0 0.0
    %476 = vmatprep.subr.mxu0 0.0
    %477 = vmatpush2.msra.mxu0 0.0
    %478 = vmatprep.subr.mxu0 0.0
    %479 = vmatpush2.msra.mxu0 0.0
    %480 = vmatprep.subr.mxu0 0.0
    %481 = vmatpush2.msra.mxu0 0.0
    %482 = vmatprep.subr.mxu0 0.0
    %483 = vmatpush2.msra.mxu0 0.0
    %484 = vmatprep.subr.mxu0 0.0
    %485 = vmatpush2.msra.mxu0 0.0
    %486 = vmatprep.subr.mxu0 0.0
    %487 = vmatpush2.msra.mxu0 0.0
    %488 = vmatprep.subr.mxu0 0.0
    %489 = vmatpush2.msra.mxu0 0.0
    %490 = vmatprep.subr.mxu0 0.0
    %491 = vmatpush2.msra.mxu0 0.0
    %492 = vmatprep.subr.mxu0 0.0
    %493 = vmatpush2.msra.mxu0 0.0
    %494 = vmatprep.subr.mxu0 0.0
    %495 = vmatpush2.msra.mxu0 0.0
    %496 = vmatprep.subr.mxu0 0.0
    %497 = vmatpush2.msra.mxu0 0.0
    %498 = vmatprep.subr.mxu0 0.0
    %499 = vmatpush2.msra.mxu0 0.0
    %500 = vmatprep.subr.mxu0 0.0
    %501 = vmatpush2.msra.mxu0 0.0
    %502 = vmatprep.subr.mxu0 0.0
    %503 = vmatpush2.msra.mxu0 0.0
    %504 = vmatprep.mubr.f32.mxu0 0.0
    %505 = vmatmul.mubr.f32.gmra.mxu0 %v415
    %v506 = vpop.f32.mrf.mxu0
    %v507 = vadd.f32 %v438, %v506
    %v508 = vpop.f32.mrf.mxu0
    %509 = vmatprep.mubr.f32.mxu0 0.0
    %510 = vmatmul.mubr.f32.gmra.mxu0 %v416
    %v511 = vpop.f32.mrf.mxu0
    %v512 = vadd.f32 %v438, %v511
    %v513 = vpop.f32.mrf.mxu0
    %514 = vdwg.mxu0
    %515 = vst [vmem:[#allocation10] sm:$0xff] %v507
    %516 = vst [vmem:[#allocation10 + $0x8] sm:$0xff] %v512
    %517 = vst [vmem:[#allocation13] sm:$0x3] %v507
    %518 = vst [vmem:[#allocation13 + $0x8] sm:$0x3] %v512
    %v521 = vrot.slane %v507, 7
    %v522 = vrot.slane %v512, 7
    %v525 = vsub.f32 %v507, %v521
    %v526 = vsub.f32 %v512, %v522
    %v527 = vrcp.pop 0.2
    %v528 = vmul.f32 %v525, %v527
    %v529 = vmul.f32 %v526, %v527
    %v530 = vmul.f32 %v507, -1.5
    %v531 = vmul.f32 %v512, -1.5
    %v532 = vmul.f32 %v528, 0.3
    %v533 = vmul.f32 %v529, 0.3
    %v534 = vsub.f32 %v530, %v532
    %v535 = vsub.f32 %v531, %v533
    %v536 = vmul.f32 %v528, 0.2
    %v537 = vmul.f32 %v529, 0.2
    %v538 = vadd.f32 %v507, %v536
    %v539 = vadd.f32 %v512, %v537
    %v540 = vmul.f32 %v534, 0.2
    %v541 = vmul.f32 %v535, 0.2
    %v542 = vmul.f32 %v540, 0.2
    %v543 = vmul.f32 %v541, 0.2
    %v544 = vadd.f32 %v538, %v542
    %v545 = vadd.f32 %v539, %v543
    %546 = vst [vmem:[#allocation13 + $0x1] sm:$0x7e] %v544
    %547 = vst [vmem:[#allocation13 + $0x9] sm:$0x7e] %v545
    %548 = vst [vmem:[#allocation11] sm:$0x3] %v507
    %549 = vst [vmem:[#allocation11 + $0x8] sm:$0x3] %v512
    %550 = vst [vmem:[#allocation11 + $0x1] sm:$0x2] %v544
    %551 = vst [vmem:[#allocation11 + $0x9] sm:$0x2] %v545
    %v552 = vsub.f32 %v544, %v507
    %v553 = vsub.f32 %v545, %v512
    %v554 = vmul.f32 %v552, %v527
    %v555 = vmul.f32 %v553, %v527
    %v556 = vmul.f32 %v544, -1.5
    %v557 = vmul.f32 %v545, -1.5
    %v558 = vmul.f32 %v554, 0.3
    %v559 = vmul.f32 %v555, 0.3
    %v560 = vsub.f32 %v556, %v558
    %v561 = vsub.f32 %v557, %v559
    %v562 = vmul.f32 %v554, 0.2
    %v563 = vmul.f32 %v555, 0.2
    %v564 = vadd.f32 %v544, %v562
    %v565 = vadd.f32 %v545, %v563
    %v566 = vmul.f32 %v560, 0.2
    %v567 = vmul.f32 %v561, 0.2
    %v568 = vmul.f32 %v566, 0.2
    %v569 = vmul.f32 %v567, 0.2
    %v570 = vadd.f32 %v564, %v568
    %v571 = vadd.f32 %v565, %v569
    %572 = vst [vmem:[#allocation11 + $0x2] sm:$0x2] %v570
    %573 = vst [vmem:[#allocation11 + $0xa] sm:$0x2] %v571
    %v574 = vsub.f32 %v570, %v544
    %v575 = vsub.f32 %v571, %v545
    %v576 = vmul.f32 %v574, %v527
    %v577 = vmul.f32 %v575, %v527
    %v578 = vmul.f32 %v570, -1.5
    %v579 = vmul.f32 %v571, -1.5
    %v580 = vmul.f32 %v576, 0.3
    %v581 = vmul.f32 %v577, 0.3
    %v582 = vsub.f32 %v578, %v580
    %v583 = vsub.f32 %v579, %v581
    %v584 = vmul.f32 %v576, 0.2
    %v585 = vmul.f32 %v577, 0.2
    %v586 = vadd.f32 %v570, %v584
    %v587 = vadd.f32 %v571, %v585
    %v588 = vmul.f32 %v582, 0.2
    %v589 = vmul.f32 %v583, 0.2
    %v590 = vmul.f32 %v588, 0.2
    %v591 = vmul.f32 %v589, 0.2
    %v592 = vadd.f32 %v586, %v590
    %v593 = vadd.f32 %v587, %v591
    %594 = vst [vmem:[#allocation11 + $0x3] sm:$0x2] %v592
    %595 = vst [vmem:[#allocation11 + $0xb] sm:$0x2] %v593
    %v596 = vsub.f32 %v592, %v570
    %v597 = vsub.f32 %v593, %v571
    %v598 = vmul.f32 %v596, %v527
    %v599 = vmul.f32 %v597, %v527
    %v600 = vmul.f32 %v592, -1.5
    %v601 = vmul.f32 %v593, -1.5
    %v602 = vmul.f32 %v598, 0.3
    %v603 = vmul.f32 %v599, 0.3
    %v604 = vsub.f32 %v600, %v602
    %v605 = vsub.f32 %v601, %v603
    %v606 = vmul.f32 %v598, 0.2
    %v607 = vmul.f32 %v599, 0.2
    %v608 = vadd.f32 %v592, %v606
    %v609 = vadd.f32 %v593, %v607
    %v610 = vmul.f32 %v604, 0.2
    %v611 = vmul.f32 %v605, 0.2
    %v612 = vmul.f32 %v610, 0.2
    %v613 = vmul.f32 %v611, 0.2
    %v614 = vadd.f32 %v608, %v612
    %v615 = vadd.f32 %v609, %v613
    %616 = vst [vmem:[#allocation11 + $0x4] sm:$0x2] %v614
    %617 = vst [vmem:[#allocation11 + $0xc] sm:$0x2] %v615
    %v618 = vsub.f32 %v614, %v592
    %v619 = vsub.f32 %v615, %v593
    %v620 = vmul.f32 %v618, %v527
    %v621 = vmul.f32 %v619, %v527
    %v622 = vmul.f32 %v614, -1.5
    %v623 = vmul.f32 %v615, -1.5
    %v624 = vmul.f32 %v620, 0.3
    %v625 = vmul.f32 %v621, 0.3
    %v626 = vsub.f32 %v622, %v624
    %v627 = vsub.f32 %v623, %v625
    %v628 = vmul.f32 %v620, 0.2
    %v629 = vmul.f32 %v621, 0.2
    %v630 = vadd.f32 %v614, %v628
    %v631 = vadd.f32 %v615, %v629
    %v632 = vmul.f32 %v626, 0.2
    %v633 = vmul.f32 %v627, 0.2
    %v634 = vmul.f32 %v632, 0.2
    %v635 = vmul.f32 %v633, 0.2
    %v636 = vadd.f32 %v630, %v634
    %v637 = vadd.f32 %v631, %v635
    %638 = vst [vmem:[#allocation11 + $0x5] sm:$0x2] %v636
    %639 = vst [vmem:[#allocation11 + $0xd] sm:$0x2] %v637
    %v640 = vsub.f32 %v636, %v614
    %v641 = vsub.f32 %v637, %v615
    %v642 = vmul.f32 %v640, %v527
    %v643 = vmul.f32 %v641, %v527
    %v644 = vmul.f32 %v636, -1.5
    %v645 = vmul.f32 %v637, -1.5
    %v646 = vmul.f32 %v642, 0.3
    %v647 = vmul.f32 %v643, 0.3
    %v648 = vsub.f32 %v644, %v646
    %v649 = vsub.f32 %v645, %v647
    %v650 = vmul.f32 %v642, 0.2
    %v651 = vmul.f32 %v643, 0.2
    %v652 = vadd.f32 %v636, %v650
    %v653 = vadd.f32 %v637, %v651
    %v654 = vmul.f32 %v648, 0.2
    %v655 = vmul.f32 %v649, 0.2
    %v656 = vmul.f32 %v654, 0.2
    %v657 = vmul.f32 %v655, 0.2
    %v658 = vadd.f32 %v652, %v656
    %v659 = vadd.f32 %v653, %v657
    %660 = vst [vmem:[#allocation11 + $0x6] sm:$0x2] %v658
    %661 = vst [vmem:[#allocation11 + $0xe] sm:$0x2] %v659
    // Predicated region
    $region46: #{tpu_custom_call.1} parent=1 // pred_check
      _
    $region47: #{tpu_custom_call.1} parent=1 // pred_check_branch
      %663 = sbr.rel (0) target = $region49
    $region48: #{tpu_custom_call.1} parent=1 // pred_region
      %s665 = ssub.s32 256, 256
      %666 = vsyncadd [#allocation4], %s665
      %s667 = sshll.u32 [#allocation10], 4
      %s668 = int_to_ptr.vmem [resolvable:$true] %s667
      %673 = dma.vmem_to_hbm [thread:$0]  %s668, 256, %s7, [#allocation4], 128, 128, 8
    $region49: #{tpu_custom_call.1} parent=1 // pred_fallthru
      _
    // Predicated region
    $region50: #{tpu_custom_call.1} parent=1 // pred_check
      _
    $region51: #{tpu_custom_call.1} parent=1 // pred_check_branch
      %675 = sbr.rel (0) target = $region53
    $region52: #{tpu_custom_call.1} parent=1 // pred_region
      %s677 = ssub.s32 256, 256
      %678 = vsyncadd [#allocation12], %s677
      %s679 = sshll.u32 [#allocation11], 4
      %s680 = int_to_ptr.vmem [resolvable:$true] %s679
      %685 = dma.vmem_to_hbm [thread:$0]  %s680, 256, %s8, [#allocation12], 128, 128, 8
    $region53: #{tpu_custom_call.1} parent=1 // pred_fallthru
      _
    // Predicated region
    $region54: #{tpu_custom_call.1} parent=1 // pred_check
      _
    $region55: #{tpu_custom_call.1} parent=1 // pred_check_branch
      %687 = sbr.rel (0) target = $region57
    $region56: #{tpu_custom_call.1} parent=1 // pred_region
      %s689 = ssub.s32 256, 256
      %690 = vsyncadd [#allocation12], %s689
      %s691 = sshll.u32 [#allocation13], 4
      %s692 = int_to_ptr.vmem [resolvable:$true] %s691
      %697 = dma.vmem_to_hbm [thread:$0]  %s692, 256, %s9, [#allocation12], 128, 128, 8
    $region57: #{tpu_custom_call.1} parent=1 // pred_fallthru
      _
    // Predicated region
    $region58: #{tpu_custom_call.1} parent=1 // pred_check
      _
    $region59: #{tpu_custom_call.1} parent=1 // pred_check_branch
      %699 = sbr.rel (0) target = $region61
    $region60: #{tpu_custom_call.1} parent=1 // pred_region
      %700 = dma.done [#allocation4], 256
    $region61: #{tpu_custom_call.1} parent=1 // pred_fallthru
      _
    // Predicated region
    $region62: #{tpu_custom_call.1} parent=1 // pred_check
      _
    $region63: #{tpu_custom_call.1} parent=1 // pred_check_branch
      %702 = sbr.rel (0) target = $region65
    $region64: #{tpu_custom_call.1} parent=1 // pred_region
      %703 = dma.done [#allocation12], 256
    $region65: #{tpu_custom_call.1} parent=1 // pred_fallthru
      _
    // Predicated region
    $region66: #{tpu_custom_call.1} parent=1 // pred_check
      _
    $region67: #{tpu_custom_call.1} parent=1 // pred_check_branch
      %705 = sbr.rel (0) target = $region69
    $region68: #{tpu_custom_call.1} parent=1 // pred_region
      %706 = dma.done [#allocation12], 256
    $region69: #{tpu_custom_call.1} parent=1 // pred_fallthru
      _
    %707 = vsyncpa [#allocation3], 1
    %708 = vsyncpa [#allocation6], 1
    %709 = vsyncpa [#allocation9], 1
    %710 = vsyncpa [#allocation4], 1
    %711 = vsyncpa [#allocation12], 1

</llo_original>
